<compile_context>
chip_gen: v7x
topology: tpu7x:2x2x1
jax: 0.10.0
libtpu: 0.0.40
codegen_flags: <defaults>
</compile_context>

<pallas_src>
import numpy as np
import jax
import jax.numpy as jnp
from jax import lax
from jax.experimental import pallas as pl
from jax.experimental.pallas import tpu as pltpu


# ----------------------------------------------------------------------------
# Host-side ROIAlign sampling-weight construction (torchvision semantics,
# aligned=True, sampling_ratio=0).  Pure coordinate math -> dense weight matrix.
# Memoized; f32 throughout.
# ----------------------------------------------------------------------------
_ROI_W_CACHE = {}


def roi_align_weights(boxes, H, W, pooled_h, pooled_w, spatial_scale,
                      sampling_ratio=0, aligned=True):
    boxes = np.ascontiguousarray(np.asarray(boxes, dtype=np.float32))
    key = (boxes.tobytes(), H, W, pooled_h, pooled_w, float(spatial_scale),
           int(sampling_ratio), bool(aligned))
    cached = _ROI_W_CACHE.get(key)
    if cached is not None:
        return cached

    R = boxes.shape[0]
    KK = pooled_h * pooled_w
    out = np.zeros((R, KK, H * W), dtype=np.float32)
    offset = 0.5 if aligned else 0.0
    for r in range(R):
        x1, y1, x2, y2 = boxes[r, 1:5]
        start_w = x1 * spatial_scale - offset
        start_h = y1 * spatial_scale - offset
        roi_w = x2 * spatial_scale - offset - start_w
        roi_h = y2 * spatial_scale - offset - start_h
        if not aligned:
            roi_w = max(roi_w, 1.0)
            roi_h = max(roi_h, 1.0)
        bin_h = roi_h / pooled_h
        bin_w = roi_w / pooled_w
        gh = sampling_ratio if sampling_ratio > 0 else int(np.ceil(roi_h / pooled_h))
        gw = sampling_ratio if sampling_ratio > 0 else int(np.ceil(roi_w / pooled_w))
        count = max(gh * gw, 1)
        gh_c, gw_c = max(gh, 0), max(gw, 0)

        ys = (start_h + np.arange(pooled_h, dtype=np.float32)[:, None] * bin_h
              + (np.arange(gh_c, dtype=np.float32)[None, :] + 0.5) * bin_h / max(gh_c, 1))
        xs = (start_w + np.arange(pooled_w, dtype=np.float32)[:, None] * bin_w
              + (np.arange(gw_c, dtype=np.float32)[None, :] + 0.5) * bin_w / max(gw_c, 1))
        shape = (pooled_h, pooled_w, gh_c, gw_c)
        Y = np.broadcast_to(ys[:, None, :, None], shape)
        X = np.broadcast_to(xs[None, :, None, :], shape)
        valid = (Y >= -1.0) & (Y <= H) & (X >= -1.0) & (X <= W)

        yy = np.maximum(Y, 0.0)
        xx = np.maximum(X, 0.0)
        y_low = yy.astype(np.int64)
        x_low = xx.astype(np.int64)
        y_high = np.where(y_low >= H - 1, H - 1, y_low + 1)
        yy = np.where(y_low >= H - 1, np.float32(H - 1), yy)
        y_low = np.minimum(y_low, H - 1)
        x_high = np.where(x_low >= W - 1, W - 1, x_low + 1)
        xx = np.where(x_low >= W - 1, np.float32(W - 1), xx)
        x_low = np.minimum(x_low, W - 1)
        ly, lx = yy - y_low, xx - x_low
        hy, hx = 1.0 - ly, 1.0 - lx

        bins = np.broadcast_to(
            (np.arange(pooled_h)[:, None] * pooled_w
             + np.arange(pooled_w)[None, :])[:, :, None, None], shape)
        scale = np.float32(1.0 / count)
        for wgt, pix in ((hy * hx, y_low * W + x_low),
                         (hy * lx, y_low * W + x_high),
                         (ly * hx, y_high * W + x_low),
                         (ly * lx, y_high * W + x_high)):
            np.add.at(out[r], (bins[valid], pix[valid]), wgt[valid] * scale)

    _ROI_W_CACHE[key] = out
    return out


def _group_boxes(batch_idx, num_images):
    """One group per image that has boxes; G = max #boxes on any image.

    Returns (slot_box, group_img, G): slot_box[g*G + k] = original box index (or
    -1 for a padding slot); group_img[g] = the image every box of group g reads.
    """
    per_img = [(n, np.nonzero(batch_idx == n)[0]) for n in range(num_images)]
    per_img = [(n, ids) for n, ids in per_img if ids.size > 0]
    G = max(ids.size for _, ids in per_img)
    slot_box, group_img = [], []
    for n, ids in per_img:
        padded = np.full(G, -1, dtype=np.int64)
        padded[:ids.size] = ids
        slot_box.append(padded)
        group_img.append(n)
    return np.concatenate(slot_box), np.asarray(group_img, dtype=np.int32), G


def _pick_c_block(C, T, HW, itemsize, budget_bytes=4 << 20):
    """Channel tile for the feature block: full C when small / not 128-aligned,
    otherwise the largest 128-multiple power-of-two divisor under the budget."""
    if C < 256 or C % 128 != 0:
        return C
    cb = C
    while cb > 128 and cb % 2 == 0 and cb * T * HW * itemsize > budget_bytes:
        cb //= 2
    return cb if (cb % 128 == 0 and C % cb == 0) else C


# ----------------------------------------------------------------------------
# Fused (temporal mean -> ROIAlign -> MaxPool2d) Pallas kernel
# ----------------------------------------------------------------------------
def _make_roi_kernel(G, KKP, T, HW, inv_t):
    def kernel(gimg_ref, w_ref, f_ref, o_ref):
        # gimg_ref: (num_groups,) SMEM scalar prefetch (used by index_maps only)
        # w_ref:    (1, G*KKP, HW) bf16    per-box ROIAlign weights (1/count folded)
        # f_ref:    (1, c_blk, T*HW)       one image's feature channels, all T steps
        # o_ref:    (1, G, c_blk) f32      max over ROI bins, per box slot
        del gimg_ref
        # Temporal sum in f32 over the T lane-chunks (VPU adds), then mean.
        fsum = f_ref[0, :, 0:HW].astype(jnp.float32)
        for t in range(1, T):
            fsum = fsum + f_ref[0, :, t * HW:(t + 1) * HW].astype(jnp.float32)
        fmean = (fsum * inv_t).astype(jnp.bfloat16)                  # (c_blk, HW)
        # ROIAlign as ONE matmul, contracting over HW (trans_b form):
        #   (G*KKP, HW) x (c_blk, HW)^T -> (G*KKP, c_blk), f32 accumulate.
        bins = lax.dot_general(w_ref[0], fmean,
                               dimension_numbers=(((1,), (1,)), ((), ())),
                               preferred_element_type=jnp.float32)
        # MaxPool2d(resolution): single reshaped max over the KKP bins per slot.
        # Padded bin rows duplicate bin 0, padded box slots are all-zero weights.
        c_blk = bins.shape[1]
        o_ref[0] = jnp.max(bins.reshape(G, KKP, c_blk), axis=1)
    return kernel


def roi_align_temporal_maxpool(group_img, weights, feat, *, G, KKP, T, HW, c_block):
    # group_img: (num_groups,) int32            (scalar prefetch)
    # weights:   (num_groups, G*KKP, HW) bf16
    # feat:      (N, C, T*HW)                   (free reshape of NCTHW, no cast)
    # returns:   (num_groups, G, C) f32
    num_groups, GKP, _ = weights.shape
    N, C, THW = feat.shape
    n_ct = C // c_block
    inv_t = 1.0 / float(T)

    feat_block = c_block * THW * feat.dtype.itemsize
    w_block = GKP * HW * weights.dtype.itemsize
    out_block = G * c_block * 4
    vmem_limit = int(min(max(2 * (feat_block + w_block + out_block) + (4 << 20),
                             32 << 20), 64 << 20))

    return pl.pallas_call(
        _make_roi_kernel(G, KKP, T, HW, inv_t),
        out_shape=jax.ShapeDtypeStruct((num_groups, G, C), jnp.float32),
        grid_spec=pltpu.PrefetchScalarGridSpec(
            num_scalar_prefetch=1,
            grid=(num_groups, n_ct),
            in_specs=[
                # Weight block index is constant along the inner c axis -> Pallas
                # keeps it resident (no re-fetch).
                pl.BlockSpec((1, GKP, THW // THW * HW if False else HW),
                             lambda g, c, gimg: (g, 0, 0)),
                # Feature block index comes from the prefetched group->image map,
                # so features are never duplicated per box in HBM.
                pl.BlockSpec((1, c_block, THW), lambda g, c, gimg: (gimg[g], c, 0)),
            ],
            out_specs=pl.BlockSpec((1, G, c_block), lambda g, c, gimg: (g, 0, c)),
        ),
        compiler_params=pltpu.CompilerParams(
            dimension_semantics=("parallel", "parallel"),
            vmem_limit_bytes=vmem_limit),
    )(group_img, weights, feat)


# ----------------------------------------------------------------------------
# Projection + activation Pallas kernel (bf16 MXU, lane-dense padded classes)
# ----------------------------------------------------------------------------
def _make_proj_kernel(act_func):
    def kernel(x_ref, w_ref, b_ref, o_ref):
        logits = jnp.dot(x_ref[...].astype(jnp.bfloat16), w_ref[...],
                         preferred_element_type=jnp.float32) + b_ref[...]
        if act_func == "softmax":
            m = jnp.max(logits, axis=-1, keepdims=True)
            e = jnp.exp(logits - m)
            o_ref[...] = e / jnp.sum(e, axis=-1, keepdims=True)
        else:  # sigmoid
            o_ref[...] = 1.0 / (1.0 + jnp.exp(-logits))
    return kernel


def project_act(x, proj_w, proj_b, act_func="softmax"):
    R, D = x.shape
    num_classes = proj_w.shape[1]
    c_pad = max(128, ((num_classes + 127) // 128) * 128)       # lane-dense output
    r_pad = ((R + 7) // 8) * 8                                 # sublane-aligned rows

    # Padded params built host-side once per call (tiny); padded classes get a
    # -1e9 bias so softmax drives them to exactly zero before the slice.
    w_np = np.asarray(proj_w, np.float32)
    b_np = np.asarray(proj_b, np.float32)
    w_pad = np.zeros((D, c_pad), np.float32)
    w_pad[:, :num_classes] = w_np
    b_pad = np.full((1, c_pad), -1e9 if act_func == "softmax" else 0.0, np.float32)
    b_pad[0, :num_classes] = b_np

    x_pad = x if r_pad == R else jnp.zeros((r_pad, D), x.dtype).at[:R].set(x)
    out = pl.pallas_call(
        _make_proj_kernel(act_func),
        out_shape=jax.ShapeDtypeStruct((r_pad, c_pad), jnp.float32),
        in_specs=[pl.BlockSpec(memory_space=pltpu.MemorySpace.VMEM)
                  for _ in range(3)],
        out_specs=pl.BlockSpec(memory_space=pltpu.MemorySpace.VMEM),
    )(x_pad, jnp.asarray(w_pad, jnp.bfloat16), jnp.asarray(b_pad))
    return out[:R, :num_classes]


# ----------------------------------------------------------------------------
# Full head forward
# ----------------------------------------------------------------------------
def resnet_roi_head_forward(inputs, bboxes, proj_w, proj_b,
                            pool_size, resolution, scale_factor,
                            dropout_rate=0.0, act_func="softmax", aligned=True):
    assert act_func in ("softmax", "sigmoid")
    num_pathways = len(inputs)
    bboxes_np = np.asarray(bboxes, dtype=np.float32)
    R = bboxes_np.shape[0]
    batch_idx = bboxes_np[:, 0].astype(np.int64)
    N = inputs[0].shape[0]

    # Host-side grouping: one group per image (G = max boxes/image), plus the
    # permutation that restores the original box order after pooling.
    slot_box, group_img, G = _group_boxes(batch_idx, N)
    num_groups = group_img.shape[0]
    valid = slot_box >= 0
    pos = np.zeros(R, dtype=np.int32)
    pos[slot_box[valid]] = np.nonzero(valid)[0].astype(np.int32)
    group_img_dev = jnp.asarray(group_img)
    pos_dev = jnp.asarray(pos)
    gg, kk = divmod(np.arange(num_groups * G), G)

    pooled = []
    for p in range(num_pathways):
        x = inputs[p]                                   # (N, C, T, H, W) NCTHW
        Np, C, T, H, W = x.shape
        assert Np == N
        assert pool_size[p][0] == T, "temporal AvgPool3d must collapse T to 1"
        ph, pw = resolution[p]
        KK, HW = ph * pw, H * W
        KKP = ((KK + 7) // 8) * 8                       # sublane-aligned rows/box

        # Host: ROIAlign bilinear weights (1/count folded; 1/T is applied to the
        # temporal mean in-kernel), packed into per-image box groups.
        w = roi_align_weights(bboxes_np, H, W, ph, pw,
                              1.0 / scale_factor[p], 0, aligned)     # (R, KK, HW)
        wg = np.zeros((num_groups, G, KKP, HW), dtype=np.float32)
        sb_v = slot_box[valid]
        wg[gg[valid], kk[valid], :KK] = w[sb_v]
        wg[gg[valid], kk[valid], KK:] = w[sb_v, 0:1]    # duplicate bin 0, not zero
        wg_dev = jnp.asarray(wg.reshape(num_groups, G * KKP, HW), jnp.bfloat16)

        # Device: pure reshape NCTHW -> (N, C, T*HW); no transpose, no dtype cast.
        feat = x.reshape(N, C, T * HW)
        c_block = _pick_c_block(C, T, HW, x.dtype.itemsize)

        out_g = roi_align_temporal_maxpool(group_img_dev, wg_dev, feat,
                                           G=G, KKP=KKP, T=T, HW=HW,
                                           c_block=c_block)
        pooled.append(out_g.reshape(num_groups * G, C))

    x = jnp.concatenate(pooled, axis=1)[pos_dev]        # un-group -> (R, sum(dim_in))
    # dropout_rate == 0.0 -> the module has no dropout layer in that case.
    # TODO(synk): training-time dropout (dropout_rate > 0.0) not implemented.
    return project_act(x, proj_w, proj_b, act_func)


# ----------------------------------------------------------------------------
if __name__ == "__main__":
    key = jax.random.PRNGKey(0)
    k1, k2, k3, k4 = jax.random.split(key, 4)

    # Small SlowFast-like config
    N = 2
    dim_in = [4, 8]
    T_per_path = [4, 8]
    H = Wsp = 16
    num_classes = 10
    pool_size = [[4, 1, 1], [8, 1, 1]]
    resolution = [[7, 7], [7, 7]]
    scale_factor = [16, 16]

    inputs = [
        jax.random.normal(k1, (N, dim_in[0], T_per_path[0], H, Wsp), jnp.float32),
        jax.random.normal(k2, (N, dim_in[1], T_per_path[1], H, Wsp), jnp.float32),
    ]
    # bboxes: (R, 5) = (batch_index, x1, y1, x2, y2) in input-image coordinates
    bboxes = jnp.array(
        [[0.0,  10.0,  20.0, 200.0, 220.0],
         [0.0,  32.0,  32.0, 128.0, 160.0],
         [1.0,   0.0,   0.0, 255.0, 255.0]], dtype=jnp.float32)

    D = sum(dim_in)
    bound = 1.0 / np.sqrt(D)
    proj_w = jax.random.uniform(k3, (D, num_classes), jnp.float32, -bound, bound)
    proj_b = jax.random.uniform(k4, (num_classes,), jnp.float32, -bound, bound)

    out = resnet_roi_head_forward(inputs, bboxes, proj_w, proj_b,
                                  pool_size, resolution, scale_factor,
                                  dropout_rate=0.0, act_func="softmax",
                                  aligned=True)
    out = np.asarray(jax.block_until_ready(out))
    assert out.shape == (bboxes.shape[0], num_classes)
    assert np.all(np.isfinite(out))
    assert np.allclose(out.sum(-1), 1.0, atol=1e-3)

    # Pure numpy f32 reference of the same forward pass (un-fused, un-grouped).
    bboxes_np = np.asarray(bboxes, np.float32)
    Rb = bboxes_np.shape[0]
    pooled_ref = []
    for p in range(len(inputs)):
        xp = np.asarray(inputs[p], np.float32)
        _, C, T, Hs, Ws = xp.shape
        fmean = xp.mean(axis=2).reshape(N, C, Hs * Ws)
        wref = roi_align_weights(bboxes_np, Hs, Ws, resolution[p][0], resolution[p][1],
                                 1.0 / scale_factor[p], 0, True)
        pr = np.zeros((Rb, C), np.float32)
        for r in range(Rb):
            n = int(bboxes_np[r, 0])
            pr[r] = (wref[r] @ fmean[n].T).max(axis=0)
        pooled_ref.append(pr)
    xref = np.concatenate(pooled_ref, axis=1)
    logits = xref @ np.asarray(proj_w, np.float32) + np.asarray(proj_b, np.float32)
    logits -= logits.max(axis=1, keepdims=True)
    e = np.exp(logits)
    ref = e / e.sum(axis=1, keepdims=True)
    np.testing.assert_allclose(out, ref, atol=5e-2, rtol=0)

    print("KERNEL_OK")
</pallas_src>

<mosaic_0001>
module attributes {stable_mosaic.version = 11 : i64} {
  func.func @kernel(%arg0: i32, %arg1: i32, %arg2: memref<2xi32, #tpu.memory_space<smem>>, %arg3: memref<1x112x256xbf16, #tpu.memory_space<vmem>>, %arg4: memref<1x4x1024xf32, #tpu.memory_space<vmem>>, %arg5: memref<1x2x4xf32, #tpu.memory_space<vmem>>) attributes {dimension_semantics = [#tpu.dimension_semantics<parallel>, #tpu.dimension_semantics<parallel>], iteration_bounds = array<i64: 2, 1>, scalar_prefetch = 1 : i64, scratch_operands = 0 : i64, tpu.core_type = #tpu.core_type<tc>, window_params = [{transform_indices = @transform_0, window_bounds = array<i64: 1, 112, 256>}, {transform_indices = @transform_1, window_bounds = array<i64: 1, 4, 1024>}, {transform_indices = @transform_2, window_bounds = array<i64: 1, 2, 4>}]} {
    %c0 = arith.constant 0 : index
    %c0_0 = arith.constant 0 : index
    %c0_1 = arith.constant 0 : index
    %0 = vector.load %arg4[%c0, %c0_0, %c0_1] : memref<1x4x1024xf32, #tpu.memory_space<vmem>>, vector<1x4x256xf32>
    %1 = vector.shape_cast %0 : vector<1x4x256xf32> to vector<4x256xf32>
    %c0_2 = arith.constant 0 : index
    %c0_3 = arith.constant 0 : index
    %c256 = arith.constant 256 : index
    %2 = vector.load %arg4[%c0_2, %c0_3, %c256] : memref<1x4x1024xf32, #tpu.memory_space<vmem>>, vector<1x4x256xf32>
    %3 = vector.shape_cast %2 : vector<1x4x256xf32> to vector<4x256xf32>
    %4 = arith.addf %1, %3 : vector<4x256xf32>
    %c0_4 = arith.constant 0 : index
    %c0_5 = arith.constant 0 : index
    %c512 = arith.constant 512 : index
    %5 = vector.load %arg4[%c0_4, %c0_5, %c512] : memref<1x4x1024xf32, #tpu.memory_space<vmem>>, vector<1x4x256xf32>
    %6 = vector.shape_cast %5 : vector<1x4x256xf32> to vector<4x256xf32>
    %7 = arith.addf %4, %6 : vector<4x256xf32>
    %c0_6 = arith.constant 0 : index
    %c0_7 = arith.constant 0 : index
    %c768 = arith.constant 768 : index
    %8 = vector.load %arg4[%c0_6, %c0_7, %c768] : memref<1x4x1024xf32, #tpu.memory_space<vmem>>, vector<1x4x256xf32>
    %9 = vector.shape_cast %8 : vector<1x4x256xf32> to vector<4x256xf32>
    %10 = arith.addf %7, %9 : vector<4x256xf32>
    %cst = arith.constant 2.500000e-01 : f32
    %11 = vector.broadcast %cst : f32 to vector<4x256xf32>
    %12 = arith.mulf %10, %11 : vector<4x256xf32>
    %13 = arith.truncf %12 : vector<4x256xf32> to vector<4x256xbf16>
    %c0_8 = arith.constant 0 : index
    %c0_9 = arith.constant 0 : index
    %c0_10 = arith.constant 0 : index
    %14 = vector.load %arg3[%c0_8, %c0_9, %c0_10] : memref<1x112x256xbf16, #tpu.memory_space<vmem>>, vector<1x112x256xbf16>
    %15 = vector.shape_cast %14 : vector<1x112x256xbf16> to vector<112x256xbf16>
    %cst_11 = arith.constant dense<0.000000e+00> : vector<112x4xf32>
    %16 = tpu.matmul %15, %13, %cst_11 {dimension_numbers = #tpu.dot_dimension_numbers<[1], [1], [0], [0], [0, 0, 1, 0], [], []>} : vector<112x256xbf16>, vector<4x256xbf16>, vector<112x4xf32> -> vector<112x4xf32>
    %17 = vector.shape_cast %16 : vector<112x4xf32> to vector<2x56x4xf32>
    %cst_12 = arith.constant dense<0xFF800000> : vector<2x4xf32>
    %18 = vector.multi_reduction <maximumf>, %17, %cst_12 [1] : vector<2x56x4xf32> to vector<2x4xf32>
    %c0_13 = arith.constant 0 : index
    %c0_14 = arith.constant 0 : index
    %c0_15 = arith.constant 0 : index
    %19 = vector.load %arg5[%c0_13, %c0_14, %c0_15] : memref<1x2x4xf32, #tpu.memory_space<vmem>>, vector<1x2x4xf32>
    %20 = vector.shape_cast %19 : vector<1x2x4xf32> to vector<2x4xf32>
    %21 = vector.shape_cast %18 : vector<2x4xf32> to vector<1x2x4xf32>
    tpu.vector_store %arg5[%c0_13, %c0_14, %c0_15], %21 {strides = array<i32>} : memref<1x2x4xf32, #tpu.memory_space<vmem>>, vector<1x2x4xf32>,
    return
  }
  func.func @transform_0(%arg0: i32, %arg1: i32, %arg2: memref<2xi32, #tpu.memory_space<smem>>) -> (i32, i32, i32) {
    %c0_i32 = arith.constant 0 : i32
    %c0_i32_0 = arith.constant 0 : i32
    %c0_i32_1 = arith.constant 0 : i32
    return %arg0, %c0_i32, %c0_i32_0 : i32, i32, i32
  }
  func.func @transform_1(%arg0: i32, %arg1: i32, %arg2: memref<2xi32, #tpu.memory_space<smem>>) -> (i32, i32, i32) {
    %0 = arith.index_cast %arg0 : i32 to index
    %1 = memref.load %arg2[%0] : memref<2xi32, #tpu.memory_space<smem>>
    %c0_i32 = arith.constant 0 : i32
    %c0_i32_0 = arith.constant 0 : i32
    return %1, %arg1, %c0_i32 : i32, i32, i32
  }
  func.func @transform_2(%arg0: i32, %arg1: i32, %arg2: memref<2xi32, #tpu.memory_space<smem>>) -> (i32, i32, i32) {
    %c0_i32 = arith.constant 0 : i32
    %c0_i32_0 = arith.constant 0 : i32
    return %arg0, %c0_i32, %arg1 : i32, i32, i32
  }
}

</mosaic_0001>

<llo_original>
// kernel: tpu_custom_call.1
$region0: #{tpu_custom_call.1}
  #allocation0 [shape = 'u32[]', space=smem, size = 0x4, offset = 0x4, fixed_abs, tag = 'smem constant byte address 0x4 - core index']
  #allocation1 [shape = 'u32[144,128]{1,0:T(1,128)}', space=vmem, size = 0x12000, scoped, tag = 'internal scratch']
  #allocation2 [shape = 's32[1]{0}', space=sflag, size = 0x4, scoped, tag = 'scoped memory for tpu_custom_call.1']
  #allocation3 [shape = 'u8[512]{0}', space=smem, size = 0x200, scoped, tag = 'prefetched SMEM operand 0']
  %s0 = inlined_call_operand.hbm [shape: s32[2], index: 0, kind: input, shape index: {}]
  %s1 = inlined_call_operand.hbm [shape: bf16[2,112,256], index: 1, kind: input, shape index: {}]
  %s2 = inlined_call_operand.hbm [shape: f32[2,4,1024], index: 2, kind: input, shape index: {}]
  %s3 = inlined_call_operand.hbm [shape: f32[2,2,4], index: 3, kind: output, shape index: {}]
  %s4 = sld [smem:[#allocation0]]
  $region49: #{tpu_custom_call.1} parent=0
    _
  %s6 = ssub.s32 1, %s4
  %s7 = scalar_select 0, %s6, %s4
  %9 = dma.hbm_to_smem %s0, 16, [#allocation3], [#allocation2]
  %10 = dma.done [#allocation2], 16
  %11 = sfence
  $region1: #{tpu_custom_call.1} parent=0
    #allocation4 [shape = 'u8[114688]{0}', space=vmem, size = 0x1c000, scoped, tag = 'input window, operand 1']
    #allocation5 [shape = 's32[2]{0}', space=sflag, size = 0x8, scoped, tag = 'scoped memory for tpu_custom_call.1']
    #allocation6 [shape = 's32[2]{0}', space=sflag, size = 0x8, scoped, tag = 'scoped memory for tpu_custom_call.1']
    #allocation7 [shape = 'u8[32768]{0}', space=vmem, size = 0x8000, scoped, tag = 'input window, operand 2']
    #allocation8 [shape = 's32[2]{0}', space=sflag, size = 0x8, scoped, tag = 'scoped memory for tpu_custom_call.1']
    #allocation9 [shape = 'u8[2048]{0}', space=vmem, size = 0x800, scoped, tag = 'output window, operand 0']
    %12 = vsyncpa [#allocation5], 0
    %s13 = scalar_lea.sflag [#allocation5], 1
    %14 = vsyncpa %s13, 0
    %15 = vsyncpa [#allocation8], 0
    %s16 = scalar_lea.sflag [#allocation8], 1
    %17 = vsyncpa %s16, 0
    %18 = vsyncpa [#allocation6], 0
    %s19 = scalar_lea.sflag [#allocation6], 1
    %20 = vsyncpa %s19, 0
    loop: start=0, step=1, limit=4
    $region2: #{tpu_custom_call.1} parent=1 // loop_pre_header
      _
    $region3: #{tpu_custom_call.1} parent=1 // loop_header
      %s22 = sphi 0, %s26
      %p23 = scmp.ge.s32.totalorder %s22, 4
      %s29 = sphi 0, %s41
      %s30 = sphi 0, %s37
      %s31 = sphi 0, %s29
      %s32 = sphi 0, %s30
      %s33 = sphi 0, %s31
      %s34 = sphi 0, %s32
      %s44 = sphi 0, %s46
      %s47 = sphi 0, %s44
      %s48 = sphi 0, %s47
      %s64 = sphi 0, %s48
      %s74 = sphi 0, %s76
      %s77 = sphi 0, %s74
      %s78 = sphi 0, %s77
      %s94 = sphi 0, %s78
      %s102 = sphi 0, %s104
      %s105 = sphi 0, %s102
      %s106 = sphi 0, %s105
      %s122 = sphi 0, %s106
    $region4: #{tpu_custom_call.1} parent=1 // loop_header_branch
      %25 = sbr.rel (%p23) target = $region8
    $region5: #{tpu_custom_call.1} parent=1 // loop_body
      %s27 = ssub.s32 %s22, 1
      %s28 = ssub.s32 %s22, 2
      %s35 = sadd.s32 1, %s30
      %p36 = scmp.ge.s32.totalorder %s35, 1
      %s37 = scalar_select %p36, 0, %s35
      %s38 = sadd.s32 1, %s29
      %s39 = scalar_select %p36, %s38, %s29
      %p40 = scmp.ge.s32.totalorder %s39, 2
      %s41 = scalar_select %p40, 0, %s39
      %s42 = ssub.s32 %s29, %s41
      %p43 = scmp.eq.s32.totalorder %s42, 0
      %s45 = sadd.s32 %s44, 1
      %s46 = scalar_select %p43, %s44, %s45
      %p49 = pneg %p43
      %p50 = scmp.eq.s32.totalorder %s22, 1
      %p51 = por %p49, %p50
      %p52 = scmp.ne.s32.totalorder %s44, %s47
      %p53 = scmp.eq.s32.totalorder %s22, 0
      %p54 = por %p52, %p53
      %p55 = scmp.ne.s32.totalorder %s44, %s47
      %p56 = scmp.eq.s32.totalorder %s27, 1
      %p57 = por %p55, %p56
      %p58 = scmp.ne.s32.totalorder %s47, %s48
      %p59 = scmp.eq.s32.totalorder %s27, 0
      %p60 = por %p58, %p59
      %p61 = scmp.ne.s32.totalorder %s47, %s48
      %p62 = scmp.eq.s32.totalorder %s28, 1
      %p63 = por %p61, %p62
      %p65 = scmp.ne.s32.totalorder %s48, %s64
      %p66 = scmp.eq.s32.totalorder %s28, 0
      %p67 = por %p65, %p66
      %s68 = sld [smem:[#allocation3 + %s29]]
      %s69 = sld [smem:[#allocation3 + %s41]]
      %s70 = ssub.s32 %s68, %s69
      %s71 = ssub.s32 %s30, %s37
      %s72 = sor.u32 %s70, %s71
      %p73 = scmp.eq.s32.totalorder %s72, 0
      %s75 = sadd.s32 %s74, 1
      %s76 = scalar_select %p73, %s74, %s75
      %p79 = pneg %p73
      %p80 = scmp.eq.s32.totalorder %s22, 1
      %p81 = por %p79, %p80
      %p82 = scmp.ne.s32.totalorder %s74, %s77
      %p83 = scmp.eq.s32.totalorder %s22, 0
      %p84 = por %p82, %p83
      %p85 = scmp.ne.s32.totalorder %s74, %s77
      %p86 = scmp.eq.s32.totalorder %s27, 1
      %p87 = por %p85, %p86
      %p88 = scmp.ne.s32.totalorder %s77, %s78
      %p89 = scmp.eq.s32.totalorder %s27, 0
      %p90 = por %p88, %p89
      %p91 = scmp.ne.s32.totalorder %s77, %s78
      %p92 = scmp.eq.s32.totalorder %s28, 1
      %p93 = por %p91, %p92
      %p95 = scmp.ne.s32.totalorder %s78, %s94
      %p96 = scmp.eq.s32.totalorder %s28, 0
      %p97 = por %p95, %p96
      %s98 = ssub.s32 %s29, %s41
      %s99 = ssub.s32 %s30, %s37
      %s100 = sor.u32 %s98, %s99
      %p101 = scmp.eq.s32.totalorder %s100, 0
      %s103 = sadd.s32 %s102, 1
      %s104 = scalar_select %p101, %s102, %s103
      %p107 = pneg %p101
      %p108 = scmp.eq.s32.totalorder %s22, 1
      %p109 = por %p107, %p108
      %p110 = scmp.ne.s32.totalorder %s102, %s105
      %p111 = scmp.eq.s32.totalorder %s22, 0
      %p112 = por %p110, %p111
      %p113 = scmp.ne.s32.totalorder %s102, %s105
      %p114 = scmp.eq.s32.totalorder %s27, 1
      %p115 = por %p113, %p114
      %p116 = scmp.ne.s32.totalorder %s105, %s106
      %p117 = scmp.eq.s32.totalorder %s27, 0
      %p118 = por %p116, %p117
      %p119 = scmp.ne.s32.totalorder %s105, %s106
      %p120 = scmp.eq.s32.totalorder %s28, 1
      %p121 = por %p119, %p120
      %p123 = scmp.ne.s32.totalorder %s106, %s122
      %p124 = scmp.eq.s32.totalorder %s28, 0
      %p125 = por %p123, %p124
      %p126 = scmp.le.s32.totalorder 1, %s22
      %p127 = scmp.lt.s32.totalorder %s22, 3
      %p128 = pnand %p126, %p127
      %p129 = pneg %p128
      // Predicated region
      $region9: #{tpu_custom_call.1} parent=5 // pred_check
        _
      $region10: #{tpu_custom_call.1} parent=5 // pred_check_branch
        %131 = sbr.rel (%p128) target = $region12
      $region11: #{tpu_custom_call.1} parent=5 // pred_region
        %s132 = ssub.s32 %s22, 1
      $region12: #{tpu_custom_call.1} parent=5 // pred_fallthru
        _
      %p133 = scmp.lt.s32.totalorder %s22, 2
      // Predicated region
      $region13: #{tpu_custom_call.1} parent=5 // pred_check
        %p134 = pneg %p133
      $region14: #{tpu_custom_call.1} parent=5 // pred_check_branch
        %136 = sbr.rel (%p134) target = $region16
      $region15: #{tpu_custom_call.1} parent=5 // pred_region
        // Predicated region
        $region17: #{tpu_custom_call.1} parent=15 // pred_check
          %p137 = pneg %p54
        $region18: #{tpu_custom_call.1} parent=15 // pred_check_branch
          %139 = sbr.rel (%p137) target = $region20
        $region19: #{tpu_custom_call.1} parent=15 // pred_region
          %s140 = sand.u32 %s44, 1
          %s141 = scalar_lea.sflag [#allocation5], %s140
          %s142 = sand.u32 %s44, 1
          %s143 = smul.addr %s142, 112
          %s144 = scalar_lea.vmem [#allocation4], %s143
          %s146 = ssub.s32 1792, 1792
          %147 = vsyncadd %s141, %s146
          %s148 = smul.addr %s29, 28
          %s149 = smul.addr %s148, 64
          %s150 = scalar_lea.hbm %s1, %s149
          %s151 = sshll.u32 %s144, 4
          %s152 = int_to_ptr.vmem [resolvable:$true] %s151
          %157 = dma.hbm_to_vmem [thread:$0]  %s150, 1792, %s152, %s141, 128, 128, 8
        $region20: #{tpu_custom_call.1} parent=15 // pred_fallthru
          _
        // Predicated region
        $region21: #{tpu_custom_call.1} parent=15 // pred_check
          %p158 = pneg %p84
        $region22: #{tpu_custom_call.1} parent=15 // pred_check_branch
          %160 = sbr.rel (%p158) target = $region24
        $region23: #{tpu_custom_call.1} parent=15 // pred_region
          %s161 = sand.u32 %s74, 1
          %s162 = scalar_lea.sflag [#allocation8], %s161
          %s163 = sand.u32 %s74, 1
          %s164 = smul.addr %s163, 32
          %s165 = scalar_lea.vmem [#allocation7], %s164
          %s166 = sld [smem:[#allocation3 + %s29]]
          %s168 = ssub.s32 512, 512
          %169 = vsyncadd %s162, %s168
          %s170 = smul.addr %s30, 8
          %s171 = smul.addr %s166, 8
          %s172 = sadd.s32 %s170, %s171
          %s173 = smul.addr %s172, 64
          %s174 = scalar_lea.hbm %s2, %s173
          %s176 = sshll.u32 %s165, 4
          %s177 = int_to_ptr.vmem [resolvable:$true] %s176
          %179 = dma.hbm_to_vmem [thread:$0]  %s174, 512, %s177, %s162
        $region24: #{tpu_custom_call.1} parent=15 // pred_fallthru
          _
      $region16: #{tpu_custom_call.1} parent=5 // pred_fallthru
        _
      %p180 = scmp.le.s32.totalorder 1, %s22
      %p181 = scmp.lt.s32.totalorder %s22, 3
      %p182 = pnand %p180, %p181
      %p183 = pneg %p182
      // Predicated region
      $region25: #{tpu_custom_call.1} parent=5 // pred_check
        _
      $region26: #{tpu_custom_call.1} parent=5 // pred_check_branch
        %185 = sbr.rel (%p182) target = $region28
      $region27: #{tpu_custom_call.1} parent=5 // pred_region
        %s186 = ssub.s32 %s22, 1
        %s187 = sand.u32 %s47, 1
        %s188 = scalar_lea.sflag [#allocation5], %s187
        %s189 = sand.u32 %s47, 1
        %s190 = smul.addr %s189, 112
        %s191 = scalar_lea.vmem [#allocation4], %s190
        // Predicated region
        $region29: #{tpu_custom_call.1} parent=27 // pred_check
          %p192 = pneg %p60
        $region30: #{tpu_custom_call.1} parent=27 // pred_check_branch
          %194 = sbr.rel (%p192) target = $region32
        $region31: #{tpu_custom_call.1} parent=27 // pred_region
          %195 = dma.done %s188, 1792
        $region32: #{tpu_custom_call.1} parent=27 // pred_fallthru
          _
        %s196 = sand.u32 %s77, 1
        %s197 = scalar_lea.sflag [#allocation8], %s196
        %s198 = sand.u32 %s77, 1
        %s199 = smul.addr %s198, 32
        %s200 = scalar_lea.vmem [#allocation7], %s199
        // Predicated region
        $region33: #{tpu_custom_call.1} parent=27 // pred_check
          %p201 = pneg %p90
        $region34: #{tpu_custom_call.1} parent=27 // pred_check_branch
          %203 = sbr.rel (%p201) target = $region36
        $region35: #{tpu_custom_call.1} parent=27 // pred_region
          %204 = dma.done %s197, 512
        $region36: #{tpu_custom_call.1} parent=27 // pred_fallthru
          _
        %s205 = sand.u32 %s47, 1
        %s206 = scalar_lea.sflag [#allocation5], %s205
        %s207 = sand.u32 %s47, 1
        %s208 = smul.addr %s207, 112
        %s209 = scalar_lea.vmem [#allocation4], %s208
        %p210 = pneg %p60
        %p211 = pneg %p57
        %s212 = sand.u32 %s77, 1
        %s213 = scalar_lea.sflag [#allocation8], %s212
        %s214 = sand.u32 %s77, 1
        %s215 = smul.addr %s214, 32
        %s216 = scalar_lea.vmem [#allocation7], %s215
        %p217 = pneg %p90
        %p218 = pneg %p87
        %p219 = pneg %p118
        %p220 = pneg %p115
        %s221 = sand.u32 %s105, 1
        %s222 = scalar_lea.sflag [#allocation6], %s221
        %s223 = sand.u32 %s105, 1
        %s224 = smul.addr %s223, 2
        %s225 = scalar_lea.vmem [#allocation9], %s224
        %s226 = sld [smem:[#allocation3 + %s31]]
        %v228 = vld [vmem:[%s200] sm:$0xff]
        %v229 = vld [vmem:[%s200 + $0x8] sm:$0xff]
        %v230 = vadd.f32 %v228, %v229
        %v231 = vld [vmem:[%s200 + $0x10] sm:$0xff]
        %v232 = vadd.f32 %v230, %v231
        %v233 = vld [vmem:[%s200 + $0x18] sm:$0xff]
        %v234 = vadd.f32 %v232, %v233
        %v235 = vmul.f32 %v234, 0.25
        %v237 = vcombine.high %v235, %v235
        %v239 = vpack.c.bf16 %v235, %v235
        %v240 = vpack.c.bf16 %v237, %v237
        %v241 = vld [vmem:[%s191] sm:$0xff]
        %v242 = vld [vmem:[%s191 + $0x8] sm:$0xff]
        %v243 = vld [vmem:[%s191 + $0x10] sm:$0xff]
        %v244 = vld [vmem:[%s191 + $0x18] sm:$0xff]
        %v245 = vld [vmem:[%s191 + $0x20] sm:$0xff]
        %v246 = vld [vmem:[%s191 + $0x28] sm:$0xff]
        %v247 = vld [vmem:[%s191 + $0x30] sm:$0xff]
        %v248 = vld [vmem:[%s191 + $0x38] sm:$0xff]
        %v249 = vld [vmem:[%s191 + $0x40] sm:$0xff]
        %v250 = vld [vmem:[%s191 + $0x48] sm:$0xff]
        %v251 = vld [vmem:[%s191 + $0x50] sm:$0xff]
        %v252 = vld [vmem:[%s191 + $0x58] sm:$0xff]
        %v253 = vld [vmem:[%s191 + $0x60] sm:$0xff]
        %v254 = vld [vmem:[%s191 + $0x68] sm:$0xff]
        %v269 = vunpack.c.l.b16 %v241
        %v270 = vunpack.c.h.b16 %v241
        %v271 = vunpack.c.l.b16 %v242
        %v272 = vunpack.c.h.b16 %v242
        %v273 = vunpack.c.l.b16 %v243
        %v274 = vunpack.c.h.b16 %v243
        %v275 = vunpack.c.l.b16 %v244
        %v276 = vunpack.c.h.b16 %v244
        %v277 = vunpack.c.l.b16 %v245
        %v278 = vunpack.c.h.b16 %v245
        %v279 = vunpack.c.l.b16 %v246
        %v280 = vunpack.c.h.b16 %v246
        %v281 = vunpack.c.l.b16 %v247
        %v282 = vunpack.c.h.b16 %v247
        %v283 = vunpack.c.l.b16 %v248
        %v284 = vunpack.c.h.b16 %v248
        %v285 = vunpack.c.l.b16 %v249
        %v286 = vunpack.c.h.b16 %v249
        %v287 = vunpack.c.l.b16 %v250
        %v288 = vunpack.c.h.b16 %v250
        %v289 = vunpack.c.l.b16 %v251
        %v290 = vunpack.c.h.b16 %v251
        %v291 = vunpack.c.l.b16 %v252
        %v292 = vunpack.c.h.b16 %v252
        %v293 = vunpack.c.l.b16 %v253
        %v294 = vunpack.c.h.b16 %v253
        %v295 = vunpack.c.l.b16 %v254
        %v296 = vunpack.c.h.b16 %v254
        %v297 = vpack.c.b16 %v271, %v269
        %v298 = vpack.c.b16 %v272, %v270
        %v299 = vpack.c.b16 %v275, %v273
        %v300 = vpack.c.b16 %v276, %v274
        %v301 = vpack.c.b16 %v279, %v277
        %v302 = vpack.c.b16 %v280, %v278
        %v303 = vpack.c.b16 %v283, %v281
        %v304 = vpack.c.b16 %v284, %v282
        %v305 = vpack.c.b16 %v287, %v285
        %v306 = vpack.c.b16 %v288, %v286
        %v307 = vpack.c.b16 %v291, %v289
        %v308 = vpack.c.b16 %v292, %v290
        %v309 = vpack.c.b16 %v295, %v293
        %v310 = vpack.c.b16 %v296, %v294
        %325 = vmatprep.subr.bf16.mxu0 %v240
        %326 = vmatpush1.bf16.xpose.msra.mxu0 %v239
        %327 = vmatprep.subr.bf16.mxu0 0
        %328 = vmatpush1.bf16.xpose.msra.mxu0 0
        %329 = vmatprep.subr.bf16.mxu0 0
        %330 = vmatpush1.bf16.xpose.msra.mxu0 0
        %331 = vmatprep.subr.bf16.mxu0 0
        %332 = vmatpush1.bf16.xpose.msra.mxu0 0
        %333 = vmatprep.subr.bf16.mxu0 0
        %334 = vmatpush1.bf16.xpose.msra.mxu0 0
        %335 = vmatprep.subr.bf16.mxu0 0
        %336 = vmatpush1.bf16.xpose.msra.mxu0 0
        %337 = vmatprep.subr.bf16.mxu0 0
        %338 = vmatpush1.bf16.xpose.msra.mxu0 0
        %339 = vmatprep.subr.bf16.mxu0 0
        %340 = vmatpush1.bf16.xpose.msra.mxu0 0
        %341 = vmatprep.subr.bf16.mxu0 0
        %342 = vmatpush1.bf16.xpose.msra.mxu0 0
        %343 = vmatprep.subr.bf16.mxu0 0
        %344 = vmatpush1.bf16.xpose.msra.mxu0 0
        %345 = vmatprep.subr.bf16.mxu0 0
        %346 = vmatpush1.bf16.xpose.msra.mxu0 0
        %347 = vmatprep.subr.bf16.mxu0 0
        %348 = vmatpush1.bf16.xpose.msra.mxu0 0
        %349 = vmatprep.subr.bf16.mxu0 0
        %350 = vmatpush1.bf16.xpose.msra.mxu0 0
        %351 = vmatprep.subr.bf16.mxu0 0
        %352 = vmatpush1.bf16.xpose.msra.mxu0 0
        %353 = vmatprep.subr.bf16.mxu0 0
        %354 = vmatpush1.bf16.xpose.msra.mxu0 0
        %355 = vmatprep.subr.bf16.mxu0 0
        %356 = vmatpush1.bf16.xpose.msra.mxu0 0
        %357 = vmatprep.mubr.bf16.mxu0 %v298
        %358 = vmatmul.mubr.bf16.gmra.mrb[0].mxu0 %v297
        %v359 = vpop.f32.mrb[0].mxu0
        %v360 = vadd.f32 0.0, %v359
        %v361 = vpop.f32.mrb[0].mxu0
        %v362 = vpop.f32.mrb[0].mxu0
        %v363 = vadd.f32 0.0, %v362
        %v364 = vpop.f32.mrb[0].mxu0
        %365 = vmatprep.mubr.bf16.mxu0 %v300
        %366 = vmatmul.mubr.bf16.gmra.mrb[0].mxu0 %v299
        %v367 = vpop.f32.mrb[0].mxu0
        %v368 = vadd.f32 0.0, %v367
        %v369 = vpop.f32.mrb[0].mxu0
        %v370 = vpop.f32.mrb[0].mxu0
        %v371 = vadd.f32 0.0, %v370
        %v372 = vpop.f32.mrb[0].mxu0
        %373 = vmatprep.mubr.bf16.mxu0 %v302
        %374 = vmatmul.mubr.bf16.gmra.mrb[0].mxu0 %v301
        %v375 = vpop.f32.mrb[0].mxu0
        %v376 = vadd.f32 0.0, %v375
        %v377 = vpop.f32.mrb[0].mxu0
        %v378 = vpop.f32.mrb[0].mxu0
        %v379 = vadd.f32 0.0, %v378
        %v380 = vpop.f32.mrb[0].mxu0
        %381 = vmatprep.mubr.bf16.mxu0 %v304
        %382 = vmatmul.mubr.bf16.gmra.mrb[0].mxu0 %v303
        %v383 = vpop.f32.mrb[0].mxu0
        %v384 = vadd.f32 0.0, %v383
        %v385 = vpop.f32.mrb[0].mxu0
        %v386 = vpop.f32.mrb[0].mxu0
        %v387 = vadd.f32 0.0, %v386
        %v388 = vpop.f32.mrb[0].mxu0
        %389 = vmatprep.mubr.bf16.mxu0 %v306
        %390 = vmatmul.mubr.bf16.gmra.mrb[0].mxu0 %v305
        %v391 = vpop.f32.mrb[0].mxu0
        %v392 = vadd.f32 0.0, %v391
        %v393 = vpop.f32.mrb[0].mxu0
        %v394 = vpop.f32.mrb[0].mxu0
        %v395 = vadd.f32 0.0, %v394
        %v396 = vpop.f32.mrb[0].mxu0
        %397 = vmatprep.mubr.bf16.mxu0 %v308
        %398 = vmatmul.mubr.bf16.gmra.mrb[0].mxu0 %v307
        %v399 = vpop.f32.mrb[0].mxu0
        %v400 = vadd.f32 0.0, %v399
        %v401 = vpop.f32.mrb[0].mxu0
        %v402 = vpop.f32.mrb[0].mxu0
        %v403 = vadd.f32 0.0, %v402
        %v404 = vpop.f32.mrb[0].mxu0
        %405 = vmatprep.mubr.bf16.mxu0 %v310
        %406 = vmatmul.mubr.bf16.gmra.mrb[0].mxu0 %v309
        %v407 = vpop.f32.mrb[0].mxu0
        %v408 = vadd.f32 0.0, %v407
        %v409 = vpop.f32.mrb[0].mxu0
        %v410 = vpop.f32.mrb[0].mxu0
        %v411 = vadd.f32 0.0, %v410
        %v412 = vpop.f32.mrb[0].mxu0
        %413 = vdwg.mxu0
        %vm414 = vcmask 31744
        %v415 = vsel %vm414, %v360, -inf
        %v416 = vsel %vm414, %v363, -inf
        %v417 = vsel %vm414, %v368, -inf
        %v418 = vmax.f32 %v415, %v417
        %v419 = vsel %vm414, %v371, -inf
        %v420 = vmax.f32 %v416, %v419
        %v421 = vsel %vm414, %v376, -inf
        %v422 = vmax.f32 %v418, %v421
        %v423 = vsel %vm414, %v379, -inf
        %v424 = vmax.f32 %v420, %v423
        %v425 = vsel %vm414, %v384, -inf
        %v426 = vmax.f32 %v422, %v425
        %v427 = vmax.f32 %v426, %v424
        %v428 = vrot.slane %v427, 4
        %v429 = vmax.f32 %v427, %v428
        %v430 = vrot.slane %v429, 2
        %v431 = vmax.f32 %v429, %v430
        %v432 = vrot.slane %v431, 1
        %v433 = vmax.f32 %v431, %v432
        %v434 = vsel %vm414, %v387, -inf
        %v435 = vsel %vm414, %v392, -inf
        %v436 = vsel %vm414, %v395, -inf
        %v437 = vmax.f32 %v434, %v436
        %v438 = vsel %vm414, %v400, -inf
        %v439 = vmax.f32 %v435, %v438
        %v440 = vsel %vm414, %v403, -inf
        %v441 = vmax.f32 %v437, %v440
        %v442 = vsel %vm414, %v408, -inf
        %v443 = vmax.f32 %v439, %v442
        %v444 = vsel %vm414, %v411, -inf
        %v445 = vmax.f32 %v441, %v444
        %v446 = vmax.f32 %v445, %v443
        %v447 = vrot.slane %v446, 4
        %v448 = vmax.f32 %v446, %v447
        %v449 = vrot.slane %v448, 2
        %v450 = vmax.f32 %v448, %v449
        %v451 = vrot.slane %v450, 1
        %v452 = vmax.f32 %v450, %v451
        %vm455 = vcmask 1041409
        %v456 = vsel %vm455, %v452, %v433
        %vm458 = vcmask 25600
        %459 = vst.msk [vmem:[%s225] sm:$0x3] %vm458, %v456
        %s460 = sand.u32 %s105, 1
        %s461 = scalar_lea.sflag [#allocation6], %s460
        %s462 = sand.u32 %s105, 1
        %s463 = smul.addr %s462, 2
        %s464 = scalar_lea.vmem [#allocation9], %s463
        // Predicated region
        $region37: #{tpu_custom_call.1} parent=27 // pred_check
          %p465 = pneg %p115
        $region38: #{tpu_custom_call.1} parent=27 // pred_check_branch
          %467 = sbr.rel (%p465) target = $region40
        $region39: #{tpu_custom_call.1} parent=27 // pred_region
          %s469 = ssub.s32 32, 32
          %470 = vsyncadd %s461, %s469
          %s471 = sadd.s32 %s32, %s31
          %s472 = smul.addr %s471, 32
          %s473 = scalar_lea.hbm %s3, %s472
          %s475 = sshll.u32 %s464, 4
          %s476 = int_to_ptr.vmem [resolvable:$true] %s475
          %478 = dma.vmem_to_hbm [thread:$0]  %s476, 32, %s473, %s461
        $region40: #{tpu_custom_call.1} parent=27 // pred_fallthru
          _
      $region28: #{tpu_custom_call.1} parent=5 // pred_fallthru
        _
      %p479 = scmp.le.s32.totalorder 2, %s22
      // Predicated region
      $region41: #{tpu_custom_call.1} parent=5 // pred_check
        %p480 = pneg %p479
      $region42: #{tpu_custom_call.1} parent=5 // pred_check_branch
        %482 = sbr.rel (%p480) target = $region44
      $region43: #{tpu_custom_call.1} parent=5 // pred_region
        %s483 = ssub.s32 %s22, 2
        // Predicated region
        $region45: #{tpu_custom_call.1} parent=43 // pred_check
          %p484 = pneg %p121
        $region46: #{tpu_custom_call.1} parent=43 // pred_check_branch
          %486 = sbr.rel (%p484) target = $region48
        $region47: #{tpu_custom_call.1} parent=43 // pred_region
          %s487 = sand.u32 %s106, 1
          %s488 = scalar_lea.sflag [#allocation6], %s487
          %s489 = sand.u32 %s106, 1
          %s490 = smul.addr %s489, 2
          %s491 = scalar_lea.vmem [#allocation9], %s490
          %492 = dma.done %s488, 32
        $region48: #{tpu_custom_call.1} parent=43 // pred_fallthru
          _
      $region44: #{tpu_custom_call.1} parent=5 // pred_fallthru
        _
    $region6: #{tpu_custom_call.1} parent=1 // loop_footer
      %s26 = sadd.s32 1, %s22
    $region7: #{tpu_custom_call.1} parent=1 // loop_footer_branch
      %21 = sbr.rel target = $region3
    $region8: #{tpu_custom_call.1} parent=1 // loop_exit
      _
    %493 = vsyncpa [#allocation5], 1
    %s494 = scalar_lea.sflag [#allocation5], 1
    %495 = vsyncpa %s494, 1
    %496 = vsyncpa [#allocation8], 1
    %s497 = scalar_lea.sflag [#allocation8], 1
    %498 = vsyncpa %s497, 1
    %499 = vsyncpa [#allocation6], 1
    %s500 = scalar_lea.sflag [#allocation6], 1
    %501 = vsyncpa %s500, 1

</llo_original>
